<compile_context>
chip_gen: v6e
topology: v6e:2x2x1
jax: 0.10.0
libtpu: 0.0.40
codegen_flags: <defaults>
</compile_context>

<pallas_src>
import functools
import math

import jax
import jax.numpy as jnp
from jax import lax
from jax.experimental import pallas as pl
from jax.experimental.pallas import tpu as pltpu

_TARGET_BLOCK_ELEMS = 1024 * 1024   # ~4 MiB per f32 input block
_TARGET_SLAB_ELEMS = 8 * 1024       # ~8 vregs per input per inner-loop slab
_COL_CANDIDATES = (1024, 512, 256, 128)
_CLIP_LO = 0.0001
_CLIP_HI = 1.0 - 0.0001             # identical literal to the PyTorch module


def _loss_tile(x_any, t_any, m_any):
    """Per-element loss on one tile.

    Select-form (no bool->f32 casts, no mul/mul/add combine); sigmoid written
    as exp(-x) so the transcendental sits on the EUP slot.  Mask compared in
    its native dtype (int or float)."""
    x = x_any.astype(jnp.float32)
    t = t_any.astype(jnp.float32)
    e = jnp.exp(-x)                                        # EUP
    sig = jnp.clip(1.0 / (1.0 + e), _CLIP_LO, _CLIP_HI)
    d = sig - t
    # mask==1 -> 5*(sig-t)^2 ; mask==0 -> sig^2 ; anything else -> 0
    return jnp.where(m_any == 1, 5.0 * d * d,
                     jnp.where(m_any == 0, sig * sig, 0.0))


def _mse_logits_kernel(logits_ref, targets_ref, mask_ref, out_ref, *,
                       total_rows, slab_rows, need_row_mask):
    block_rows, cols = logits_ref.shape
    p = pl.program_id(0)
    k = pl.program_id(1)

    # Zero the resident per-split accumulator at the start of its reduction.
    @pl.when(k == 0)
    def _():
        out_ref[...] = jnp.zeros_like(out_ref)

    if block_rows % 8 != 0:
        # Tiny input: the single block equals the full (sub-8-row) extent.
        out_ref[0, :block_rows, :] += _loss_tile(
            logits_ref[...], targets_ref[...], mask_ref[...])
        return

    n_slabs = block_rows // slab_rows
    fold = slab_rows // 8

    def block_sum(masked, rows_left):
        # Explicit slab loop: never materializes a block-sized loss tile; the
        # working set is a handful of vregs plus the (8, cols) carry.
        def body(s, acc):
            off = pl.multiple_of(s * slab_rows, slab_rows)
            loss = _loss_tile(logits_ref[pl.ds(off, slab_rows), :],
                              targets_ref[pl.ds(off, slab_rows), :],
                              mask_ref[pl.ds(off, slab_rows), :])
            if masked:
                row_ids = lax.broadcasted_iota(
                    jnp.int32, (slab_rows, cols), 0) + off
                # Select (not multiply-by-0) so NaN/Inf from garbage OOB rows
                # cannot propagate.
                loss = jnp.where(row_ids < rows_left, loss, 0.0)
            if fold > 1:
                loss = loss.reshape(fold, 8, cols).sum(axis=0)
            return acc + loss

        return lax.fori_loop(0, n_slabs, body,
                             jnp.zeros((8, cols), jnp.float32))

    blk = p * pl.num_programs(1) + k
    rows_left = total_rows - blk * block_rows

    if need_row_mask:
        # Masking cost is paid only by ragged-tail / clamped-duplicate steps.
        @pl.when(rows_left >= block_rows)
        def _():
            out_ref[0] += block_sum(False, rows_left)

        @pl.when(rows_left < block_rows)
        def _():
            out_ref[0] += block_sum(True, rows_left)
    else:
        out_ref[0] += block_sum(False, rows_left)


def _num_tensorcores():
    """Best-effort TensorCores-per-chip query (2 on v7x-class parts)."""
    try:
        info = pltpu.get_tpu_info()
    except Exception:
        return None
    for attr in ("num_cores", "core_count", "num_tensorcores",
                 "tensorcore_count", "num_cores_per_chip", "cores_per_chip"):
        val = getattr(info, attr, None)
        if val is None:
            continue
        try:
            val = int(val)
        except Exception:
            continue
        if val > 0:
            return val
    return None


def mse_with_logits_loss(logits, targets, mask, reduction="mean"):
    """Pallas TPU implementation of MSEWithLogitsLoss.forward.

    NOTE: 'mean' follows the module's semantics: sum(loss) / batch_size
    (NOT / element count, unlike standard MSELoss)."""
    assert reduction == "mean", "only reduction='mean' implemented in-kernel"
    # TODO(synk): reduction='none' (unreduced elementwise loss map) not implemented.
    assert logits.shape == targets.shape == mask.shape
    batch = logits.shape[0]
    n = math.prod(logits.shape)

    # Flatten (free).  Compute is upcast to f32 in-kernel, so bf16 logits or a
    # narrow integer mask are accepted as-is (mask stays in its narrowest
    # dtype end-to-end; only bool is widened to int8).
    lg = logits.reshape(-1)
    tg = targets.reshape(-1)
    mk = mask.reshape(-1)
    if mk.dtype == jnp.bool_:
        mk = mk.astype(jnp.int8)

    # Lane width that divides N -> free reshape.  Only for awkward N do we
    # fall back to a small 1-D pad (mask padded with -1 => exactly zero loss).
    cols = next((c for c in _COL_CANDIDATES if n % c == 0), None)
    if cols is None:
        cols = 128
        pad = (-n) % cols
        lg = jnp.pad(lg, (0, pad))
        tg = jnp.pad(tg, (0, pad))
        mk = jnp.pad(mk, (0, pad), constant_values=-1)
        n = n + pad
    rows = n // cols

    lg = lg.reshape(rows, cols)
    tg = tg.reshape(rows, cols)
    mk = mk.reshape(rows, cols)

    if rows < 8:
        block_rows = rows
        slab_rows = rows  # unused on the tiny path
    else:
        # slab: ~8K elems (multiple of 8 rows); block: ~1M elems of slabs.
        slab_rows = min(max(8, _TARGET_SLAB_ELEMS // cols), (rows // 8) * 8)
        slabs_per_block = max(1, _TARGET_BLOCK_ELEMS // (cols * slab_rows))
        block_rows = min(slabs_per_block * slab_rows,
                         (rows // slab_rows) * slab_rows)
    n_row_blocks = pl.cdiv(rows, block_rows)

    # 2-way split of the row-blocks over a leading "parallel" grid axis only
    # on 2-TensorCore parts; fall back to the split if detection is unknown
    # (harmless serial loop on 1-TC chips now that masking is pl.when-gated).
    cores = _num_tensorcores()
    if cores is None:
        cores = 2
    nsplit = 2 if (cores >= 2 and n_row_blocks >= 2) else 1
    inner = pl.cdiv(n_row_blocks, nsplit)

    need_row_mask = (rows % block_rows != 0) or (nsplit * inner != n_row_blocks)

    def in_idx(p, k):
        blk = p * inner + k
        if nsplit * inner != n_row_blocks:
            # Duplicated tail steps are clamped here and zeroed in-kernel.
            blk = jnp.minimum(blk, n_row_blocks - 1)
        return (blk, 0)

    in_spec = pl.BlockSpec((block_rows, cols), in_idx)

    kernel = functools.partial(
        _mse_logits_kernel, total_rows=rows, slab_rows=slab_rows,
        need_row_mask=need_row_mask)

    partials = pl.pallas_call(
        kernel,
        out_shape=jax.ShapeDtypeStruct((nsplit, 8, cols), jnp.float32),
        grid_spec=pltpu.PrefetchScalarGridSpec(
            num_scalar_prefetch=0,
            grid=(nsplit, inner),
            in_specs=[in_spec, in_spec, in_spec],
            out_specs=pl.BlockSpec((1, 8, cols), lambda p, k: (p, 0, 0)),
        ),
        compiler_params=pltpu.CompilerParams(
            dimension_semantics=("parallel", "arbitrary"),
            vmem_limit_bytes=48 * 1024 * 1024,
        ),
    )(lg, tg, mk)

    # Final tiny cross-lane reduce of the per-split accumulators + mean.
    return jnp.sum(partials) / batch


def _reference(logits, targets, mask):
    inputs = jnp.clip(jax.nn.sigmoid(logits.astype(jnp.float32)),
                      _CLIP_LO, _CLIP_HI)
    pos_id = (mask == 1.0).astype(jnp.float32)
    neg_id = (mask == 0.0).astype(jnp.float32)
    loss = 5.0 * pos_id * (inputs - targets) ** 2 + neg_id * inputs ** 2
    return jnp.sum(loss) / logits.shape[0]


if __name__ == "__main__":
    key = jax.random.PRNGKey(0)
    k1, k2, k3 = jax.random.split(key, 3)

    # Small NCHW shapes consistent with the module.
    B, C, H, W = 2, 4, 16, 16
    logits = jax.random.normal(k1, (B, C, H, W), dtype=jnp.float32)
    targets = jax.random.uniform(k2, (B, C, H, W), dtype=jnp.float32)
    mask = (jax.random.uniform(k3, (B, C, H, W)) > 0.7).astype(jnp.float32)

    out = mse_with_logits_loss(logits, targets, mask)
    out = jax.block_until_ready(out)
    ref = _reference(logits, targets, mask)
    assert jnp.allclose(out, ref, rtol=1e-5, atol=1e-4), (out, ref)

    # A slightly larger case exercising the multi-block / split / ragged-row /
    # slab-loop paths (still small: ~200 KiB per tensor).
    B2, C2, H2, W2 = 2, 16, 40, 40
    k4, k5, k6 = jax.random.split(jax.random.PRNGKey(0), 3)
    logits2 = jax.random.normal(k4, (B2, C2, H2, W2), dtype=jnp.float32)
    targets2 = jax.random.uniform(k5, (B2, C2, H2, W2), dtype=jnp.float32)
    mask2 = (jax.random.uniform(k6, (B2, C2, H2, W2)) > 0.7).astype(jnp.float32)

    out2 = mse_with_logits_loss(logits2, targets2, mask2)
    out2 = jax.block_until_ready(out2)
    ref2 = _reference(logits2, targets2, mask2)
    assert jnp.allclose(out2, ref2, rtol=1e-5, atol=1e-4), (out2, ref2)

    print("KERNEL_OK")
</pallas_src>

<mosaic_0001>
module attributes {stable_mosaic.version = 11 : i64} {
  func.func @_mse_logits_kernel(%arg0: i32, %arg1: i32, %arg2: memref<2x1024xf32, #tpu.memory_space<vmem>>, %arg3: memref<2x1024xf32, #tpu.memory_space<vmem>>, %arg4: memref<2x1024xf32, #tpu.memory_space<vmem>>, %arg5: memref<1x8x1024xf32, #tpu.memory_space<vmem>>) attributes {dimension_semantics = [#tpu.dimension_semantics<parallel>, #tpu.dimension_semantics<arbitrary>], iteration_bounds = array<i64: 1, 1>, scalar_prefetch = 0 : i64, scratch_operands = 0 : i64, tpu.core_type = #tpu.core_type<tc>, window_params = [{transform_indices = @transform_0, window_bounds = array<i64: 2, 1024>}, {transform_indices = @transform_1, window_bounds = array<i64: 2, 1024>}, {transform_indices = @transform_2, window_bounds = array<i64: 2, 1024>}, {transform_indices = @transform_3, window_bounds = array<i64: 1, 8, 1024>}]} {
    %c0_i32 = arith.constant 0 : i32
    %0 = arith.cmpi eq, %arg1, %c0_i32 : i32
    %1 = arith.extui %0 : i1 to i32
    %c0_i32_0 = arith.constant 0 : i32
    %2 = arith.cmpi ne, %1, %c0_i32_0 : i32
    scf.if %2 {
      %cst_20 = arith.constant 0.000000e+00 : f32
      %35 = vector.broadcast %cst_20 : f32 to vector<1x8x1024xf32>
      %c0_21 = arith.constant 0 : index
      %c0_22 = arith.constant 0 : index
      %c0_23 = arith.constant 0 : index
      %36 = vector.load %arg5[%c0_21, %c0_22, %c0_23] : memref<1x8x1024xf32, #tpu.memory_space<vmem>>, vector<1x8x1024xf32>
      tpu.vector_store %arg5[%c0_21, %c0_22, %c0_23], %35 {strides = array<i32>} : memref<1x8x1024xf32, #tpu.memory_space<vmem>>, vector<1x8x1024xf32>,
    } else {
    }
    %c0 = arith.constant 0 : index
    %c0_1 = arith.constant 0 : index
    %c0_2 = arith.constant 0 : index
    %3 = vector.load %arg5[%c0, %c0_1, %c0_2] : memref<1x8x1024xf32, #tpu.memory_space<vmem>>, vector<1x2x1024xf32>
    %4 = vector.shape_cast %3 : vector<1x2x1024xf32> to vector<2x1024xf32>
    %c0_3 = arith.constant 0 : index
    %c0_4 = arith.constant 0 : index
    %5 = vector.load %arg2[%c0_3, %c0_4] : memref<2x1024xf32, #tpu.memory_space<vmem>>, vector<2x1024xf32>
    %c0_5 = arith.constant 0 : index
    %c0_6 = arith.constant 0 : index
    %6 = vector.load %arg3[%c0_5, %c0_6] : memref<2x1024xf32, #tpu.memory_space<vmem>>, vector<2x1024xf32>
    %c0_7 = arith.constant 0 : index
    %c0_8 = arith.constant 0 : index
    %7 = vector.load %arg4[%c0_7, %c0_8] : memref<2x1024xf32, #tpu.memory_space<vmem>>, vector<2x1024xf32>
    %cst = arith.constant 0.000000e+00 : f32
    %8 = vector.broadcast %cst : f32 to vector<2x1024xf32>
    %9 = arith.subf %8, %5 : vector<2x1024xf32>
    %10 = math.exp %9 : vector<2x1024xf32>
    %cst_9 = arith.constant 1.000000e+00 : f32
    %11 = vector.broadcast %cst_9 : f32 to vector<2x1024xf32>
    %12 = arith.addf %11, %10 : vector<2x1024xf32>
    %cst_10 = arith.constant 1.000000e+00 : f32
    %13 = vector.broadcast %cst_10 : f32 to vector<2x1024xf32>
    %14 = arith.divf %13, %12 : vector<2x1024xf32>
    %cst_11 = arith.constant 9.99999974E-5 : f32
    %cst_12 = arith.constant 0.999899983 : f32
    %15 = vector.broadcast %cst_11 : f32 to vector<2x1024xf32>
    %16 = arith.maximumf %15, %14 : vector<2x1024xf32>
    %17 = vector.broadcast %cst_12 : f32 to vector<2x1024xf32>
    %18 = arith.minimumf %17, %16 : vector<2x1024xf32>
    %19 = arith.subf %18, %6 : vector<2x1024xf32>
    %cst_13 = arith.constant 1.000000e+00 : f32
    %20 = vector.broadcast %cst_13 : f32 to vector<2x1024xf32>
    %21 = arith.cmpf oeq, %7, %20 : vector<2x1024xf32>
    %cst_14 = arith.constant 5.000000e+00 : f32
    %22 = vector.broadcast %cst_14 : f32 to vector<2x1024xf32>
    %23 = arith.mulf %22, %19 : vector<2x1024xf32>
    %24 = arith.mulf %23, %19 : vector<2x1024xf32>
    %cst_15 = arith.constant 0.000000e+00 : f32
    %25 = vector.broadcast %cst_15 : f32 to vector<2x1024xf32>
    %26 = arith.cmpf oeq, %7, %25 : vector<2x1024xf32>
    %27 = arith.mulf %18, %18 : vector<2x1024xf32>
    %cst_16 = arith.constant 0.000000e+00 : f32
    %28 = vector.broadcast %cst_16 : f32 to vector<2x1024xf32>
    %29 = arith.select %26, %27, %28 : vector<2x1024xi1>, vector<2x1024xf32>
    %30 = arith.select %21, %24, %29 : vector<2x1024xi1>, vector<2x1024xf32>
    %31 = arith.addf %4, %30 : vector<2x1024xf32>
    %c0_17 = arith.constant 0 : index
    %c0_18 = arith.constant 0 : index
    %c0_19 = arith.constant 0 : index
    %32 = vector.load %arg5[%c0_17, %c0_18, %c0_19] : memref<1x8x1024xf32, #tpu.memory_space<vmem>>, vector<1x2x1024xf32>
    %33 = vector.shape_cast %32 : vector<1x2x1024xf32> to vector<2x1024xf32>
    %34 = vector.shape_cast %31 : vector<2x1024xf32> to vector<1x2x1024xf32>
    tpu.vector_store %arg5[%c0_17, %c0_18, %c0_19], %34 {strides = array<i32>} : memref<1x8x1024xf32, #tpu.memory_space<vmem>>, vector<1x2x1024xf32>,
    return
  }
  func.func @transform_0(%arg0: i32, %arg1: i32) -> (i32, i32) {
    %c1_i32 = arith.constant 1 : i32
    %0 = arith.muli %arg0, %c1_i32 : i32
    %1 = arith.addi %0, %arg1 : i32
    %c0_i32 = arith.constant 0 : i32
    %c0_i32_0 = arith.constant 0 : i32
    return %1, %c0_i32 : i32, i32
  }
  func.func @transform_1(%arg0: i32, %arg1: i32) -> (i32, i32) {
    %c1_i32 = arith.constant 1 : i32
    %0 = arith.muli %arg0, %c1_i32 : i32
    %1 = arith.addi %0, %arg1 : i32
    %c0_i32 = arith.constant 0 : i32
    %c0_i32_0 = arith.constant 0 : i32
    return %1, %c0_i32 : i32, i32
  }
  func.func @transform_2(%arg0: i32, %arg1: i32) -> (i32, i32) {
    %c1_i32 = arith.constant 1 : i32
    %0 = arith.muli %arg0, %c1_i32 : i32
    %1 = arith.addi %0, %arg1 : i32
    %c0_i32 = arith.constant 0 : i32
    %c0_i32_0 = arith.constant 0 : i32
    return %1, %c0_i32 : i32, i32
  }
  func.func @transform_3(%arg0: i32, %arg1: i32) -> (i32, i32, i32) {
    %c0_i32 = arith.constant 0 : i32
    %c0_i32_0 = arith.constant 0 : i32
    %c0_i32_1 = arith.constant 0 : i32
    return %arg0, %c0_i32, %c0_i32_0 : i32, i32, i32
  }
}

</mosaic_0001>

<llo_original>
// kernel: tpu_custom_call.1
$region0: #{tpu_custom_call.1}
  #allocation0 [shape = 'u32[]', space=smem, size = 0x4, offset = 0x4, fixed_abs, tag = 'smem constant byte address 0x4 - core index']
  #allocation1 [shape = 'u32[144,128]{1,0:T(1,128)}', space=vmem, size = 0x12000, scoped, tag = 'internal scratch']
  %s0 = inlined_call_operand.hbm [shape: f32[2,1024], index: 0, kind: input, shape index: {}]
  %s1 = inlined_call_operand.hbm [shape: f32[2,1024], index: 1, kind: input, shape index: {}]
  %s2 = inlined_call_operand.hbm [shape: f32[2,1024], index: 2, kind: input, shape index: {}]
  %s3 = inlined_call_operand.hbm [shape: f32[1,8,1024], index: 3, kind: output, shape index: {}]
  %s4 = sld [smem:[#allocation0]]
  $region38: #{tpu_custom_call.1} parent=0
    _
  %s6 = ssub.s32 1, %s4
  %s7 = scalar_select 0, %s6, %s4
  $region1: #{tpu_custom_call.1} parent=0
    #allocation2 [shape = 'u8[8192]{0}', space=vmem, size = 0x2000, scoped, tag = 'input window, operand 0, single buffered']
    #allocation3 [shape = 's32[1]{0}', space=sflag, size = 0x4, scoped, tag = 'scoped memory for tpu_custom_call.1']
    #allocation4 [shape = 's32[1]{0}', space=sflag, size = 0x4, scoped, tag = 'scoped memory for tpu_custom_call.1']
    #allocation5 [shape = 'u8[8192]{0}', space=vmem, size = 0x2000, scoped, tag = 'input window, operand 1, single buffered']
    #allocation6 [shape = 's32[1]{0}', space=sflag, size = 0x4, scoped, tag = 'scoped memory for tpu_custom_call.1']
    #allocation7 [shape = 'u8[8192]{0}', space=vmem, size = 0x2000, scoped, tag = 'input window, operand 2, single buffered']
    #allocation8 [shape = 'u8[32768]{0}', space=vmem, size = 0x8000, scoped, tag = 'output window, operand 0, single buffered']
    %8 = vsyncpa [#allocation3], 0
    %9 = vsyncpa [#allocation6], 0
    %10 = vsyncpa [#allocation4], 0
    // Predicated region
    $region2: #{tpu_custom_call.1} parent=1 // pred_check
      _
    $region3: #{tpu_custom_call.1} parent=1 // pred_check_branch
      %12 = sbr.rel (0) target = $region5
    $region4: #{tpu_custom_call.1} parent=1 // pred_region
      %s13 = sadd.s32 0, 0
      %s15 = ssub.s32 256, 256
      %16 = vsyncadd [#allocation3], %s15
      %s17 = smul.addr %s13, 8
      %s18 = smul.addr %s17, 32
      %s19 = scalar_lea.hbm %s0, %s18
      %s21 = sshll.u32 [#allocation2], 4
      %s22 = int_to_ptr.vmem [resolvable:$true] %s21
      %24 = dma.hbm_to_vmem [thread:$0]  %s19, 256, %s22, [#allocation3]
    $region5: #{tpu_custom_call.1} parent=1 // pred_fallthru
      _
    // Predicated region
    $region6: #{tpu_custom_call.1} parent=1 // pred_check
      _
    $region7: #{tpu_custom_call.1} parent=1 // pred_check_branch
      %26 = sbr.rel (0) target = $region9
    $region8: #{tpu_custom_call.1} parent=1 // pred_region
      %s27 = sadd.s32 0, 0
      %s29 = ssub.s32 256, 256
      %30 = vsyncadd [#allocation6], %s29
      %s31 = smul.addr %s27, 8
      %s32 = smul.addr %s31, 32
      %s33 = scalar_lea.hbm %s1, %s32
      %s35 = sshll.u32 [#allocation5], 4
      %s36 = int_to_ptr.vmem [resolvable:$true] %s35
      %38 = dma.hbm_to_vmem [thread:$0]  %s33, 256, %s36, [#allocation6]
    $region9: #{tpu_custom_call.1} parent=1 // pred_fallthru
      _
    // Predicated region
    $region10: #{tpu_custom_call.1} parent=1 // pred_check
      _
    $region11: #{tpu_custom_call.1} parent=1 // pred_check_branch
      %40 = sbr.rel (0) target = $region13
    $region12: #{tpu_custom_call.1} parent=1 // pred_region
      %s41 = sadd.s32 0, 0
      %s43 = ssub.s32 256, 256
      %44 = vsyncadd [#allocation6], %s43
      %s45 = smul.addr %s41, 8
      %s46 = smul.addr %s45, 32
      %s47 = scalar_lea.hbm %s2, %s46
      %s49 = sshll.u32 [#allocation7], 4
      %s50 = int_to_ptr.vmem [resolvable:$true] %s49
      %52 = dma.hbm_to_vmem [thread:$0]  %s47, 256, %s50, [#allocation6]
    $region13: #{tpu_custom_call.1} parent=1 // pred_fallthru
      _
    // Predicated region
    $region14: #{tpu_custom_call.1} parent=1 // pred_check
      _
    $region15: #{tpu_custom_call.1} parent=1 // pred_check_branch
      %54 = sbr.rel (0) target = $region17
    $region16: #{tpu_custom_call.1} parent=1 // pred_region
      %55 = dma.done [#allocation3], 256
    $region17: #{tpu_custom_call.1} parent=1 // pred_fallthru
      _
    // Predicated region
    $region18: #{tpu_custom_call.1} parent=1 // pred_check
      _
    $region19: #{tpu_custom_call.1} parent=1 // pred_check_branch
      %57 = sbr.rel (0) target = $region21
    $region20: #{tpu_custom_call.1} parent=1 // pred_region
      %58 = dma.done [#allocation6], 256
    $region21: #{tpu_custom_call.1} parent=1 // pred_fallthru
      _
    // Predicated region
    $region22: #{tpu_custom_call.1} parent=1 // pred_check
      _
    $region23: #{tpu_custom_call.1} parent=1 // pred_check_branch
      %60 = sbr.rel (0) target = $region25
    $region24: #{tpu_custom_call.1} parent=1 // pred_region
      %61 = dma.done [#allocation6], 256
    $region25: #{tpu_custom_call.1} parent=1 // pred_fallthru
      _
    %s62 = sadd.s32 0, 0
    %s63 = sadd.s32 0, 0
    %s64 = sadd.s32 0, 0
    %p65 = scmp.eq.s32.totalorder 0, 0
    // Predicated region
    $region26: #{tpu_custom_call.1} parent=1 // pred_check
      %p66 = pneg %p65
    $region27: #{tpu_custom_call.1} parent=1 // pred_check_branch
      %68 = sbr.rel (%p66) target = $region29
    $region28: #{tpu_custom_call.1} parent=1 // pred_region
      %69 = vst [vmem:[#allocation8] sm:$0xff] 0.0
      %70 = vst [vmem:[#allocation8 + $0x8] sm:$0xff] 0.0
      %71 = vst [vmem:[#allocation8 + $0x10] sm:$0xff] 0.0
      %72 = vst [vmem:[#allocation8 + $0x18] sm:$0xff] 0.0
      %73 = vst [vmem:[#allocation8 + $0x20] sm:$0xff] 0.0
      %74 = vst [vmem:[#allocation8 + $0x28] sm:$0xff] 0.0
      %75 = vst [vmem:[#allocation8 + $0x30] sm:$0xff] 0.0
      %76 = vst [vmem:[#allocation8 + $0x38] sm:$0xff] 0.0
    $region29: #{tpu_custom_call.1} parent=1 // pred_fallthru
      _
    %v77 = vld [vmem:[#allocation8] sm:$0x3]
    %v78 = vld [vmem:[#allocation8 + $0x8] sm:$0x3]
    %v79 = vld [vmem:[#allocation8 + $0x10] sm:$0x3]
    %v80 = vld [vmem:[#allocation8 + $0x18] sm:$0x3]
    %v81 = vld [vmem:[#allocation8 + $0x20] sm:$0x3]
    %v82 = vld [vmem:[#allocation8 + $0x28] sm:$0x3]
    %v83 = vld [vmem:[#allocation8 + $0x30] sm:$0x3]
    %v84 = vld [vmem:[#allocation8 + $0x38] sm:$0x3]
    %v85 = vld [vmem:[#allocation2] sm:$0xff]
    %v86 = vld [vmem:[#allocation2 + $0x8] sm:$0xff]
    %v87 = vld [vmem:[#allocation5] sm:$0xff]
    %v88 = vld [vmem:[#allocation5 + $0x8] sm:$0xff]
    %v89 = vld [vmem:[#allocation7] sm:$0xff]
    %v90 = vld [vmem:[#allocation7 + $0x8] sm:$0xff]
    %v91 = vsub.f32 0.0, %v85
    %v92 = vsub.f32 0.0, %v86
    %v93 = vmul.f32 %v91, 1.442695
    %v94 = vpow.pop %v93
    %v95 = vmul.f32 %v92, 1.442695
    %v96 = vpow.pop %v95
    %v97 = vadd.f32 %v94, 1.0
    %v98 = vadd.f32 %v96, 1.0
    %v99 = vrcp.pop %v97
    %v100 = vmul.f32 1.0, %v99
    %v101 = vrcp.pop %v98
    %v102 = vmul.f32 1.0, %v101
    %v103 = vmax.f32 %v100, 0.0001
    %v104 = vmax.f32 %v102, 0.0001
    %v105 = vmin.f32 %v103, 0.9999
    %v106 = vmin.f32 %v104, 0.9999
    %v107 = vsub.f32 %v105, %v87
    %v108 = vsub.f32 %v106, %v88
    %vm109 = vcmp.eq.f32.partialorder %v89, 1.0
    %vm110 = vcmp.eq.f32.partialorder %v90, 1.0
    %v111 = vmul.f32 %v107, 5.0
    %v112 = vmul.f32 %v108, 5.0
    %v113 = vmul.f32 %v111, %v107
    %v114 = vmul.f32 %v112, %v108
    %vm115 = vcmp.eq.f32.partialorder %v89, 0.0
    %vm116 = vcmp.eq.f32.partialorder %v90, 0.0
    %v117 = vmul.f32 %v105, %v105
    %v118 = vmul.f32 %v106, %v106
    %v119 = vsel %vm115, %v117, 0.0
    %v120 = vsel %vm116, %v118, 0.0
    %v121 = vsel %vm109, %v113, %v119
    %v122 = vsel %vm110, %v114, %v120
    %v125 = vcombine.high %v121, %v121
    %v127 = vunpack.c.l.s4 1983009808
    %v128 = vunpack.c.0.s8 %v127
    %v129 = vlaneseq
    %v130 = vshrl.u32 %v129, 7
    %v131 = vsub.s32 %v128, %v130
    %v132 = vrot.slane %v121, %v131
    %v134 = vunpack.c.l.s4 1983009808
    %v135 = vunpack.c.0.s8 %v134
    %v136 = vlaneseq
    %v137 = vshrl.u32 %v136, 7
    %v138 = vsub.s32 %v135, %v137
    %v139 = vrot.slane %v125, %v138
    %v140 = vcombine.high %v132, %v132
    %v141 = vcombine.high %v139, %v139
    %v142 = vcombine.high %v122, %v122
    %v144 = vunpack.c.l.s4 1983009808
    %v145 = vunpack.c.0.s8 %v144
    %v146 = vlaneseq
    %v147 = vshrl.u32 %v146, 7
    %v148 = vsub.s32 %v145, %v147
    %v149 = vrot.slane %v122, %v148
    %v151 = vunpack.c.l.s4 1983009808
    %v152 = vunpack.c.0.s8 %v151
    %v153 = vlaneseq
    %v154 = vshrl.u32 %v153, 7
    %v155 = vsub.s32 %v152, %v154
    %v156 = vrot.slane %v142, %v155
    %v157 = vcombine.high %v149, %v149
    %v158 = vcombine.high %v156, %v156
    %v167 = vadd.f32 %v77, %v132
    %v168 = vadd.f32 %v78, %v140
    %v169 = vadd.f32 %v79, %v139
    %v170 = vadd.f32 %v80, %v141
    %v171 = vadd.f32 %v81, %v149
    %v172 = vadd.f32 %v82, %v157
    %v173 = vadd.f32 %v83, %v156
    %v174 = vadd.f32 %v84, %v158
    %175 = vst [vmem:[#allocation8] sm:$0x3] %v167
    %176 = vst [vmem:[#allocation8 + $0x8] sm:$0x3] %v168
    %177 = vst [vmem:[#allocation8 + $0x10] sm:$0x3] %v169
    %178 = vst [vmem:[#allocation8 + $0x18] sm:$0x3] %v170
    %179 = vst [vmem:[#allocation8 + $0x20] sm:$0x3] %v171
    %180 = vst [vmem:[#allocation8 + $0x28] sm:$0x3] %v172
    %181 = vst [vmem:[#allocation8 + $0x30] sm:$0x3] %v173
    %182 = vst [vmem:[#allocation8 + $0x38] sm:$0x3] %v174
    // Predicated region
    $region30: #{tpu_custom_call.1} parent=1 // pred_check
      _
    $region31: #{tpu_custom_call.1} parent=1 // pred_check_branch
      %184 = sbr.rel (0) target = $region33
    $region32: #{tpu_custom_call.1} parent=1 // pred_region
      %s186 = ssub.s32 1024, 1024
      %187 = vsyncadd [#allocation4], %s186
      %s189 = sshll.u32 [#allocation8], 4
      %s190 = int_to_ptr.vmem [resolvable:$true] %s189
      %192 = dma.vmem_to_hbm [thread:$0]  %s190, 1024, %s3, [#allocation4]
    $region33: #{tpu_custom_call.1} parent=1 // pred_fallthru
      _
    // Predicated region
    $region34: #{tpu_custom_call.1} parent=1 // pred_check
      _
    $region35: #{tpu_custom_call.1} parent=1 // pred_check_branch
      %194 = sbr.rel (0) target = $region37
    $region36: #{tpu_custom_call.1} parent=1 // pred_region
      %195 = dma.done [#allocation4], 1024
    $region37: #{tpu_custom_call.1} parent=1 // pred_fallthru
      _
    %196 = vsyncpa [#allocation3], 1
    %197 = vsyncpa [#allocation6], 1
    %198 = vsyncpa [#allocation4], 1

</llo_original>
